<compile_context>
chip_gen: v6e
topology: v6e:2x2x1
jax: 0.10.0
libtpu: 0.0.40
codegen_flags: <defaults>
</compile_context>

<pallas_src>
import jax
import jax.numpy as jnp
import numpy as np
from jax.experimental import pallas as pl
from jax.experimental.pallas import tpu as pltpu


def _r_net_kernel(tasks_ref,                               # scalar prefetch (SMEM)
                  x_ref, tr_ref,                           # per-batch-tile inputs
                  w1_ref, b1_ref, w2_ref, b2_ref, w3_ref, b3_ref,  # VMEM-resident
                  out_ref, sel_ref):
    j = pl.program_id(1)                                   # task slot (innermost)

    @pl.when(j == 0)
    def _init():
        sel_ref[...] = jnp.zeros_like(sel_ref)

    task_id = tasks_ref[j]                                 # int32 scalar from SMEM

    @pl.when(task_id >= 0)                                 # skip -1 sentinel slots
    def _mlp():
        x = x_ref[...]                                     # (tb, D) bf16
        # layer 1: bf16 operands, f32 accumulation on the MXU
        h1 = jnp.dot(x, w1_ref[task_id],
                     preferred_element_type=jnp.float32) + b1_ref[task_id]
        h1 = jnp.maximum(h1, 0.0).astype(jnp.bfloat16)     # (tb, H)
        # layer 2
        h2 = jnp.dot(h1, w2_ref[task_id],
                     preferred_element_type=jnp.float32) + b2_ref[task_id]
        h2 = jnp.maximum(h2, 0.0).astype(jnp.bfloat16)     # (tb, H)
        # layer 3 -> reward modes for this task
        m = jnp.dot(h2, w3_ref[task_id],
                    preferred_element_type=jnp.float32) + b3_ref[task_id]  # (tb, M)
        # keep rows whose task index matches this slot
        # (emulates the [arange(B), T, :] gather of the reference module)
        tmask = tr_ref[:, 0:1] == task_id.astype(jnp.float32)   # (tb, 1) bool
        sel_ref[...] = jnp.where(tmask, m, sel_ref[...])

    @pl.when(j == pl.num_programs(1) - 1)
    def _finalize():
        sel = sel_ref[...]                                 # (tb, M)
        r_col = tr_ref[:, 1:2]                             # (tb, 1) f32
        d = (sel - r_col) ** 2                             # (tb, M)
        dmin = jnp.min(d, axis=1, keepdims=True)           # (tb, 1)
        n_modes = sel.shape[1]
        idx = jax.lax.broadcasted_iota(jnp.int32, sel.shape, 1)
        # first index achieving the minimum (matches torch.argmin tie-break)
        first_idx = jnp.min(jnp.where(d == dmin, idx, n_modes),
                            axis=1, keepdims=True)         # (tb, 1)
        onehot = idx == first_idx
        out_ref[...] = jnp.sum(jnp.where(onehot, sel, 0.0),
                               axis=1, keepdims=True)      # (tb, 1)


def _pick_batch_tile(B, max_tile=256):
    """Single tile for small B (splitting buys nothing on 1-TC v5e/v6e and only
    adds per-step overhead); MXU-sized tiles for large B.  Use max_tile=128 on
    v5e (128x128 MXU), 256 on v6e/v7x (256x256 MXU)."""
    if B <= max_tile:
        return B
    for tb in (256, 128, 64, 32, 16, 8):
        if tb <= max_tile and B % tb == 0:
            return tb
    return B            # ragged B: fall back to a single full-batch tile


def _vmem_budget_bytes(n_tasks, D, H, M, tb):
    """Conservative VMEM estimate (counts 2x buffers on every block)."""
    resident_w = 2 * 2 * n_tasks * (D * H + H * H + H * M)     # bf16 weights
    resident_b = 2 * 4 * n_tasks * (H + H + M)                 # f32 biases
    streamed = 2 * (tb * D * 2 + tb * 2 * 4 + tb * 1 * 4)      # x, tr, out tiles
    scratch = tb * M * 4                                       # sel scratch
    temps = 2 * tb * H * 4 + 2 * tb * H * 2 + tb * M * 4       # h1/h2/m temporaries
    return resident_w + resident_b + streamed + scratch + temps


def prepare_params(params, weight_dtype=jnp.bfloat16):
    """One-time conversion of PyTorch-layout params (n_tasks, out, in) into the
    kernel layout: weights pre-transposed to (n_tasks, in, out) and cast to
    bf16; biases reshaped to (n_tasks, 1, out) in f32.

    Call ONCE (at init / after each optimizer step), not per forward call."""
    w1, b1, w2, b2, w3, b3 = params
    n_tasks, H, _ = w1.shape
    M = w3.shape[1]
    w1t = jnp.transpose(w1, (0, 2, 1)).astype(weight_dtype)
    w2t = jnp.transpose(w2, (0, 2, 1)).astype(weight_dtype)
    w3t = jnp.transpose(w3, (0, 2, 1)).astype(weight_dtype)
    b1r = b1.reshape(n_tasks, 1, H).astype(jnp.float32)
    b2r = b2.reshape(n_tasks, 1, H).astype(jnp.float32)
    b3r = b3.reshape(n_tasks, 1, M).astype(jnp.float32)
    return (w1t, b1r, w2t, b2r, w3t, b3r)


def r_net_forward(S_one_hot, A_one_hot, r, nS_one_hot, T, prepared_params,
                  tasks_present=None, batch_tile=None, max_batch_tile=256):
    """Pallas implementation of r_Net.forward (jit-friendly, fixed grid).

    prepared_params: output of prepare_params (done once, not per call).
    tasks_present:   optional fixed-length int32 array of task ids, padded with
                     -1 sentinels.  Default: jnp.unique(T, size=n_tasks,
                     fill_value=-1) -- works under jit, no host sync, and the
                     grid shape never depends on batch content.
    """
    w1t, b1r, w2t, b2r, w3t, b3r = prepared_params
    n_tasks, D, H = w1t.shape
    M = w3t.shape[2]

    x = jnp.concatenate([S_one_hot, A_one_hot, nS_one_hot],
                        axis=1).astype(jnp.bfloat16)
    B = x.shape[0]
    assert x.shape[1] == D

    if tasks_present is None:
        # Fixed-length, jit-compatible dedup; absent slots become -1 sentinels
        # that the kernel skips (saves their MXU work, keeps the grid static).
        tasks_present = jnp.unique(T.astype(jnp.int32), size=n_tasks,
                                   fill_value=-1)
    tasks_present = jnp.asarray(tasks_present, dtype=jnp.int32)
    n_slots = int(tasks_present.shape[0])

    tb = _pick_batch_tile(B, max_batch_tile) if batch_tile is None else batch_tile
    assert B % tb == 0

    # Pack T (exact small ints in f32) and r into one lane-adjacent side input.
    tr = jnp.stack([T.astype(jnp.float32), r.astype(jnp.float32)], axis=1)  # (B,2)

    # VMEM budget: resident params + streamed tiles must fit v7x's 64 MiB
    # physical VMEM (we stay below 48 MiB to leave headroom).
    budget = _vmem_budget_bytes(n_tasks, D, H, M, tb)
    v7x_safe = 48 << 20
    assert budget <= v7x_safe, (
        f"Resident per-task parameters need ~{budget >> 20} MiB VMEM which "
        f"exceeds the v7x-safe budget; use the grouped-matmul streaming path "
        f"(see TODO(synk) in the header) for this many tasks.")
    vmem_limit = min(v7x_safe, max(32 << 20, int(budget * 1.5)))

    resident = lambda b, j, tasks: (0, 0, 0)   # constant index -> single HBM fill

    out = pl.pallas_call(
        _r_net_kernel,
        out_shape=jax.ShapeDtypeStruct((B, 1), jnp.float32),
        grid_spec=pltpu.PrefetchScalarGridSpec(
            num_scalar_prefetch=1,                 # tasks_present -> SMEM
            grid=(B // tb, n_slots),               # (batch tiles, task slots)
            in_specs=[
                pl.BlockSpec((tb, D), lambda b, j, tasks: (b, 0)),   # x
                pl.BlockSpec((tb, 2), lambda b, j, tasks: (b, 0)),   # [T, r]
                pl.BlockSpec((n_tasks, D, H), resident),             # W1^T (bf16)
                pl.BlockSpec((n_tasks, 1, H), resident),             # b1   (f32)
                pl.BlockSpec((n_tasks, H, H), resident),             # W2^T (bf16)
                pl.BlockSpec((n_tasks, 1, H), resident),             # b2   (f32)
                pl.BlockSpec((n_tasks, H, M), resident),             # W3^T (bf16)
                pl.BlockSpec((n_tasks, 1, M), resident),             # b3   (f32)
            ],
            out_specs=pl.BlockSpec((tb, 1), lambda b, j, tasks: (b, 0)),
            scratch_shapes=[pltpu.VMEM((tb, M), jnp.float32)],       # selected modes
        ),
        compiler_params=pltpu.CompilerParams(
            # batch tiles parallel (v7x 2-TC), task slots sequential.  On v7x
            # each TC fills its own resident-weight copy once -- acceptable;
            # per-core task-axis sharding left for the grouped-matmul rewrite.
            dimension_semantics=("parallel", "arbitrary"),
            vmem_limit_bytes=vmem_limit),
    )(tasks_present, x, tr, w1t, b1r, w2t, b2r, w3t, b3r)
    return out[:, 0]


def r_net_reference(S_one_hot, A_one_hot, r, nS_one_hot, T, params,
                    emulate_bf16=False):
    """Pure-JAX reference mirroring the PyTorch module.  With emulate_bf16=True
    inputs/weights/activations are quantized to bf16 (f32 accumulation) so it
    matches the kernel's numerics closely."""
    w1, b1, w2, b2, w3, b3 = params
    f32 = jnp.float32

    def q(a):
        a = a.astype(f32)
        return a.astype(jnp.bfloat16).astype(f32) if emulate_bf16 else a

    hi = jax.lax.Precision.HIGHEST
    x = q(jnp.concatenate([S_one_hot, A_one_hot, nS_one_hot], axis=1))
    h1 = jax.nn.relu(jnp.einsum('ik,jlk->ijl', x, q(w1), precision=hi) + b1[None])
    h2 = jax.nn.relu(jnp.einsum('ijk,jlk->ijl', q(h1), q(w2), precision=hi) + b2[None])
    m = jnp.einsum('ijk,jlk->ijl', q(h2), q(w3), precision=hi) + b3[None]  # (B,nt,16)
    B = x.shape[0]
    rm = m[jnp.arange(B), T, :]                                 # (B, 16)
    modes = jnp.argmin((rm - r[:, None].astype(f32)) ** 2, axis=1)
    return rm[jnp.arange(B), modes]


def init_params(key, n_concepts, n_skills, n_tasks):
    """Deterministic init matching weights_init_: xavier-uniform weights, zero bias."""
    d_in = 2 * n_concepts + n_skills
    shapes = [(n_tasks, 256, d_in), (n_tasks, 256, 256), (n_tasks, 16, 256)]
    params = []
    for shp in shapes:
        key, sub = jax.random.split(key)
        fan_out, fan_in = shp[1], shp[2]
        bound = np.sqrt(6.0 / (fan_in + fan_out))
        w = jax.random.uniform(sub, shp, jnp.float32, -bound, bound)
        b = jnp.zeros((shp[0], shp[1]), jnp.float32)
        params += [w, b]
    return tuple(params)


if __name__ == "__main__":
    n_concepts, n_skills, n_tasks = 8, 4, 6
    B = 16

    key = jax.random.PRNGKey(0)
    params = init_params(key, n_concepts, n_skills, n_tasks)
    prepared = prepare_params(params)     # one-time layout + bf16 conversion

    k1, k2, k3, k4, k5 = jax.random.split(jax.random.PRNGKey(0), 5)
    S_idx = jax.random.randint(k1, (B,), 0, n_concepts)
    A_idx = jax.random.randint(k2, (B,), 0, n_skills)
    nS_idx = jax.random.randint(k3, (B,), 0, n_concepts)
    S_one_hot = jax.nn.one_hot(S_idx, n_concepts, dtype=jnp.float32)
    A_one_hot = jax.nn.one_hot(A_idx, n_skills, dtype=jnp.float32)
    nS_one_hot = jax.nn.one_hot(nS_idx, n_concepts, dtype=jnp.float32)
    r = jax.random.normal(k4, (B,), jnp.float32)
    # only tasks {0,1,2} of 6 present -> exercises the -1 sentinel skip
    T = jax.random.randint(k5, (B,), 0, 3)

    # eager call
    r_eager = r_net_forward(S_one_hot, A_one_hot, r, nS_one_hot, T, prepared)
    r_eager = jax.block_until_ready(r_eager)

    # jitted call: fixed-length tasks_present -> stable grid, no host sync
    r_jit = jax.jit(r_net_forward)(S_one_hot, A_one_hot, r, nS_one_hot, T, prepared)
    r_jit = jax.block_until_ready(r_jit)

    # check against a bf16-emulating reference (kernel uses bf16 weights/acts,
    # f32 accumulation); tolerance only covers accumulation-order error
    r_ref = r_net_reference(S_one_hot, A_one_hot, r, nS_one_hot, T, params,
                            emulate_bf16=True)
    np.testing.assert_allclose(np.asarray(r_eager), np.asarray(r_ref),
                               rtol=2e-3, atol=2e-3)
    np.testing.assert_allclose(np.asarray(r_jit), np.asarray(r_ref),
                               rtol=2e-3, atol=2e-3)
    print("KERNEL_OK")
</pallas_src>

<mosaic_0001>
module attributes {stable_mosaic.version = 11 : i64} {
  func.func @_r_net_kernel(%arg0: i32, %arg1: i32, %arg2: memref<6xi32, #tpu.memory_space<smem>>, %arg3: memref<16x20xbf16, #tpu.memory_space<vmem>>, %arg4: memref<16x2xf32, #tpu.memory_space<vmem>>, %arg5: memref<6x20x256xbf16, #tpu.memory_space<vmem>>, %arg6: memref<6x1x256xf32, #tpu.memory_space<vmem>>, %arg7: memref<6x256x256xbf16, #tpu.memory_space<vmem>>, %arg8: memref<6x1x256xf32, #tpu.memory_space<vmem>>, %arg9: memref<6x256x16xbf16, #tpu.memory_space<vmem>>, %arg10: memref<6x1x16xf32, #tpu.memory_space<vmem>>, %arg11: memref<16x1xf32, #tpu.memory_space<vmem>>, %arg12: memref<16x16xf32, #tpu.memory_space<vmem>>) attributes {dimension_semantics = [#tpu.dimension_semantics<parallel>, #tpu.dimension_semantics<arbitrary>], iteration_bounds = array<i64: 1, 6>, scalar_prefetch = 1 : i64, scratch_operands = 1 : i64, tpu.core_type = #tpu.core_type<tc>, window_params = [{transform_indices = @transform_0, window_bounds = array<i64: 16, 20>}, {transform_indices = @transform_1, window_bounds = array<i64: 16, 2>}, {pipeline_mode = #tpu.pipeline_mode<synchronous>, transform_indices = @transform_2, window_bounds = array<i64: 6, 20, 256>}, {pipeline_mode = #tpu.pipeline_mode<synchronous>, transform_indices = @transform_3, window_bounds = array<i64: 6, 1, 256>}, {pipeline_mode = #tpu.pipeline_mode<synchronous>, transform_indices = @transform_4, window_bounds = array<i64: 6, 256, 256>}, {pipeline_mode = #tpu.pipeline_mode<synchronous>, transform_indices = @transform_5, window_bounds = array<i64: 6, 1, 256>}, {pipeline_mode = #tpu.pipeline_mode<synchronous>, transform_indices = @transform_6, window_bounds = array<i64: 6, 256, 16>}, {pipeline_mode = #tpu.pipeline_mode<synchronous>, transform_indices = @transform_7, window_bounds = array<i64: 6, 1, 16>}, {transform_indices = @transform_8, window_bounds = array<i64: 16, 1>}]} {
    %c0_i32 = arith.constant 0 : i32
    %0 = arith.cmpi eq, %arg1, %c0_i32 : i32
    %1 = arith.extui %0 : i1 to i32
    %c0_i32_0 = arith.constant 0 : i32
    %2 = arith.cmpi ne, %1, %c0_i32_0 : i32
    scf.if %2 {
      %cst = arith.constant 0.000000e+00 : f32
      %11 = vector.broadcast %cst : f32 to vector<16x16xf32>
      %c0 = arith.constant 0 : index
      %c0_4 = arith.constant 0 : index
      %12 = vector.load %arg12[%c0, %c0_4] : memref<16x16xf32, #tpu.memory_space<vmem>>, vector<16x16xf32>
      tpu.vector_store %arg12[%c0, %c0_4], %11 {strides = array<i32>} : memref<16x16xf32, #tpu.memory_space<vmem>>, vector<16x16xf32>,
    } else {
    }
    %3 = arith.index_cast %arg1 : i32 to index
    %4 = memref.load %arg2[%3] : memref<6xi32, #tpu.memory_space<smem>>
    %c0_i32_1 = arith.constant 0 : i32
    %5 = arith.cmpi sge, %4, %c0_i32_1 : i32
    %6 = arith.extui %5 : i1 to i32
    %c0_i32_2 = arith.constant 0 : i32
    %7 = arith.cmpi ne, %6, %c0_i32_2 : i32
    scf.if %7 {
      %c0 = arith.constant 0 : index
      %c0_4 = arith.constant 0 : index
      %11 = vector.load %arg3[%c0, %c0_4] : memref<16x20xbf16, #tpu.memory_space<vmem>>, vector<16x20xbf16>
      %12 = arith.index_cast %4 : i32 to index
      %c0_5 = arith.constant 0 : index
      %c0_6 = arith.constant 0 : index
      %13 = vector.load %arg5[%12, %c0_5, %c0_6] : memref<6x20x256xbf16, #tpu.memory_space<vmem>>, vector<1x20x256xbf16>
      %14 = vector.shape_cast %13 : vector<1x20x256xbf16> to vector<20x256xbf16>
      %cst = arith.constant dense<0.000000e+00> : vector<16x256xf32>
      %15 = tpu.matmul %11, %14, %cst {dimension_numbers = #tpu.dot_dimension_numbers<[1], [0], [0], [1], [0, 0, 1, 1], [], []>} : vector<16x20xbf16>, vector<20x256xbf16>, vector<16x256xf32> -> vector<16x256xf32>
      %16 = arith.index_cast %4 : i32 to index
      %c0_7 = arith.constant 0 : index
      %c0_8 = arith.constant 0 : index
      %17 = vector.load %arg6[%16, %c0_7, %c0_8] : memref<6x1x256xf32, #tpu.memory_space<vmem>>, vector<1x1x256xf32>
      %18 = vector.shape_cast %17 : vector<1x1x256xf32> to vector<1x256xf32>
      %19 = vector.broadcast %18 : vector<1x256xf32> to vector<16x256xf32>
      %20 = arith.addf %15, %19 : vector<16x256xf32>
      %cst_9 = arith.constant 0.000000e+00 : f32
      %21 = vector.broadcast %cst_9 : f32 to vector<16x256xf32>
      %22 = arith.maximumf %20, %21 : vector<16x256xf32>
      %23 = arith.truncf %22 : vector<16x256xf32> to vector<16x256xbf16>
      %24 = arith.index_cast %4 : i32 to index
      %c0_10 = arith.constant 0 : index
      %c0_11 = arith.constant 0 : index
      %25 = vector.load %arg7[%24, %c0_10, %c0_11] : memref<6x256x256xbf16, #tpu.memory_space<vmem>>, vector<1x256x256xbf16>
      %26 = vector.shape_cast %25 : vector<1x256x256xbf16> to vector<256x256xbf16>
      %cst_12 = arith.constant dense<0.000000e+00> : vector<16x256xf32>
      %27 = tpu.matmul %23, %26, %cst_12 {dimension_numbers = #tpu.dot_dimension_numbers<[1], [0], [0], [1], [0, 0, 1, 1], [], []>} : vector<16x256xbf16>, vector<256x256xbf16>, vector<16x256xf32> -> vector<16x256xf32>
      %28 = arith.index_cast %4 : i32 to index
      %c0_13 = arith.constant 0 : index
      %c0_14 = arith.constant 0 : index
      %29 = vector.load %arg8[%28, %c0_13, %c0_14] : memref<6x1x256xf32, #tpu.memory_space<vmem>>, vector<1x1x256xf32>
      %30 = vector.shape_cast %29 : vector<1x1x256xf32> to vector<1x256xf32>
      %31 = vector.broadcast %30 : vector<1x256xf32> to vector<16x256xf32>
      %32 = arith.addf %27, %31 : vector<16x256xf32>
      %cst_15 = arith.constant 0.000000e+00 : f32
      %33 = vector.broadcast %cst_15 : f32 to vector<16x256xf32>
      %34 = arith.maximumf %32, %33 : vector<16x256xf32>
      %35 = arith.truncf %34 : vector<16x256xf32> to vector<16x256xbf16>
      %36 = arith.index_cast %4 : i32 to index
      %c0_16 = arith.constant 0 : index
      %c0_17 = arith.constant 0 : index
      %37 = vector.load %arg9[%36, %c0_16, %c0_17] : memref<6x256x16xbf16, #tpu.memory_space<vmem>>, vector<1x256x16xbf16>
      %38 = vector.shape_cast %37 : vector<1x256x16xbf16> to vector<256x16xbf16>
      %cst_18 = arith.constant dense<0.000000e+00> : vector<16x16xf32>
      %39 = tpu.matmul %35, %38, %cst_18 {dimension_numbers = #tpu.dot_dimension_numbers<[1], [0], [0], [1], [0, 0, 1, 1], [], []>} : vector<16x256xbf16>, vector<256x16xbf16>, vector<16x16xf32> -> vector<16x16xf32>
      %40 = arith.index_cast %4 : i32 to index
      %c0_19 = arith.constant 0 : index
      %c0_20 = arith.constant 0 : index
      %41 = vector.load %arg10[%40, %c0_19, %c0_20] : memref<6x1x16xf32, #tpu.memory_space<vmem>>, vector<1x1x16xf32>
      %42 = vector.shape_cast %41 : vector<1x1x16xf32> to vector<1x16xf32>
      %43 = vector.broadcast %42 : vector<1x16xf32> to vector<16x16xf32>
      %44 = arith.addf %39, %43 : vector<16x16xf32>
      %c0_21 = arith.constant 0 : index
      %c0_22 = arith.constant 0 : index
      %45 = vector.load %arg4[%c0_21, %c0_22] : memref<16x2xf32, #tpu.memory_space<vmem>>, vector<16x1xf32>
      %46 = arith.sitofp %4 : i32 to f32
      %47 = vector.broadcast %46 : f32 to vector<16x1xf32>
      %48 = arith.cmpf oeq, %45, %47 : vector<16x1xf32>
      %c0_23 = arith.constant 0 : index
      %c0_24 = arith.constant 0 : index
      %49 = vector.load %arg12[%c0_23, %c0_24] : memref<16x16xf32, #tpu.memory_space<vmem>>, vector<16x16xf32>
      %50 = vector.shape_cast %48 : vector<16x1xi1> to vector<16x1xi1>
      %51 = vector.broadcast %50 : vector<16x1xi1> to vector<16x16xi1>
      %52 = arith.select %51, %44, %49 : vector<16x16xi1>, vector<16x16xf32>
      %c0_25 = arith.constant 0 : index
      %c0_26 = arith.constant 0 : index
      %53 = vector.load %arg12[%c0_25, %c0_26] : memref<16x16xf32, #tpu.memory_space<vmem>>, vector<16x16xf32>
      tpu.vector_store %arg12[%c0_25, %c0_26], %52 {strides = array<i32>} : memref<16x16xf32, #tpu.memory_space<vmem>>, vector<16x16xf32>,
    } else {
    }
    %c5_i32 = arith.constant 5 : i32
    %8 = arith.cmpi eq, %arg1, %c5_i32 : i32
    %9 = arith.extui %8 : i1 to i32
    %c0_i32_3 = arith.constant 0 : i32
    %10 = arith.cmpi ne, %9, %c0_i32_3 : i32
    scf.if %10 {
      %c0 = arith.constant 0 : index
      %c0_4 = arith.constant 0 : index
      %11 = vector.load %arg12[%c0, %c0_4] : memref<16x16xf32, #tpu.memory_space<vmem>>, vector<16x16xf32>
      %c0_5 = arith.constant 0 : index
      %c1 = arith.constant 1 : index
      %12 = vector.load %arg4[%c0_5, %c1] : memref<16x2xf32, #tpu.memory_space<vmem>>, vector<16x1xf32>
      %13 = vector.broadcast %12 : vector<16x1xf32> to vector<16x16xf32>
      %14 = arith.subf %11, %13 : vector<16x16xf32>
      %15 = arith.mulf %14, %14 : vector<16x16xf32>
      %cst = arith.constant dense<0x7F800000> : vector<16xf32>
      %16 = vector.multi_reduction <minimumf>, %15, %cst [1] : vector<16x16xf32> to vector<16xf32>
      %17 = vector.shape_cast %16 : vector<16xf32> to vector<16x1xf32>
      %18 = tpu.iota {dimensions = array<i32: 1>} : vector<16x16xi32>
      %19 = vector.broadcast %17 : vector<16x1xf32> to vector<16x16xf32>
      %20 = arith.cmpf oeq, %15, %19 : vector<16x16xf32>
      %c16_i32 = arith.constant 16 : i32
      %21 = vector.broadcast %c16_i32 : i32 to vector<16x16xi32>
      %22 = arith.select %20, %18, %21 : vector<16x16xi1>, vector<16x16xi32>
      %cst_6 = arith.constant dense<2147483647> : vector<16xi32>
      %23 = vector.multi_reduction <minsi>, %22, %cst_6 [1] : vector<16x16xi32> to vector<16xi32>
      %24 = vector.shape_cast %23 : vector<16xi32> to vector<16x1xi32>
      %25 = vector.broadcast %24 : vector<16x1xi32> to vector<16x16xi32>
      %26 = arith.cmpi eq, %18, %25 : vector<16x16xi32>
      %cst_7 = arith.constant 0.000000e+00 : f32
      %27 = vector.broadcast %cst_7 : f32 to vector<16x16xf32>
      %28 = arith.select %26, %11, %27 : vector<16x16xi1>, vector<16x16xf32>
      %cst_8 = arith.constant dense<0.000000e+00> : vector<16xf32>
      %29 = vector.multi_reduction <add>, %28, %cst_8 [1] : vector<16x16xf32> to vector<16xf32>
      %30 = vector.shape_cast %29 : vector<16xf32> to vector<16x1xf32>
      %c0_9 = arith.constant 0 : index
      %c0_10 = arith.constant 0 : index
      %31 = vector.load %arg11[%c0_9, %c0_10] : memref<16x1xf32, #tpu.memory_space<vmem>>, vector<16x1xf32>
      tpu.vector_store %arg11[%c0_9, %c0_10], %30 {strides = array<i32>} : memref<16x1xf32, #tpu.memory_space<vmem>>, vector<16x1xf32>,
    } else {
    }
    return
  }
  func.func @transform_0(%arg0: i32, %arg1: i32, %arg2: memref<6xi32, #tpu.memory_space<smem>>) -> (i32, i32) {
    %c0_i32 = arith.constant 0 : i32
    %c0_i32_0 = arith.constant 0 : i32
    return %arg0, %c0_i32 : i32, i32
  }
  func.func @transform_1(%arg0: i32, %arg1: i32, %arg2: memref<6xi32, #tpu.memory_space<smem>>) -> (i32, i32) {
    %c0_i32 = arith.constant 0 : i32
    %c0_i32_0 = arith.constant 0 : i32
    return %arg0, %c0_i32 : i32, i32
  }
  func.func @transform_2(%arg0: i32, %arg1: i32, %arg2: memref<6xi32, #tpu.memory_space<smem>>) -> (i32, i32, i32) {
    %c0_i32 = arith.constant 0 : i32
    %c0_i32_0 = arith.constant 0 : i32
    %c0_i32_1 = arith.constant 0 : i32
    %c0_i32_2 = arith.constant 0 : i32
    return %c0_i32, %c0_i32_0, %c0_i32_1 : i32, i32, i32
  }
  func.func @transform_3(%arg0: i32, %arg1: i32, %arg2: memref<6xi32, #tpu.memory_space<smem>>) -> (i32, i32, i32) {
    %c0_i32 = arith.constant 0 : i32
    %c0_i32_0 = arith.constant 0 : i32
    %c0_i32_1 = arith.constant 0 : i32
    %c0_i32_2 = arith.constant 0 : i32
    return %c0_i32, %c0_i32_0, %c0_i32_1 : i32, i32, i32
  }
  func.func @transform_4(%arg0: i32, %arg1: i32, %arg2: memref<6xi32, #tpu.memory_space<smem>>) -> (i32, i32, i32) {
    %c0_i32 = arith.constant 0 : i32
    %c0_i32_0 = arith.constant 0 : i32
    %c0_i32_1 = arith.constant 0 : i32
    %c0_i32_2 = arith.constant 0 : i32
    return %c0_i32, %c0_i32_0, %c0_i32_1 : i32, i32, i32
  }
  func.func @transform_5(%arg0: i32, %arg1: i32, %arg2: memref<6xi32, #tpu.memory_space<smem>>) -> (i32, i32, i32) {
    %c0_i32 = arith.constant 0 : i32
    %c0_i32_0 = arith.constant 0 : i32
    %c0_i32_1 = arith.constant 0 : i32
    %c0_i32_2 = arith.constant 0 : i32
    return %c0_i32, %c0_i32_0, %c0_i32_1 : i32, i32, i32
  }
  func.func @transform_6(%arg0: i32, %arg1: i32, %arg2: memref<6xi32, #tpu.memory_space<smem>>) -> (i32, i32, i32) {
    %c0_i32 = arith.constant 0 : i32
    %c0_i32_0 = arith.constant 0 : i32
    %c0_i32_1 = arith.constant 0 : i32
    %c0_i32_2 = arith.constant 0 : i32
    return %c0_i32, %c0_i32_0, %c0_i32_1 : i32, i32, i32
  }
  func.func @transform_7(%arg0: i32, %arg1: i32, %arg2: memref<6xi32, #tpu.memory_space<smem>>) -> (i32, i32, i32) {
    %c0_i32 = arith.constant 0 : i32
    %c0_i32_0 = arith.constant 0 : i32
    %c0_i32_1 = arith.constant 0 : i32
    %c0_i32_2 = arith.constant 0 : i32
    return %c0_i32, %c0_i32_0, %c0_i32_1 : i32, i32, i32
  }
  func.func @transform_8(%arg0: i32, %arg1: i32, %arg2: memref<6xi32, #tpu.memory_space<smem>>) -> (i32, i32) {
    %c0_i32 = arith.constant 0 : i32
    %c0_i32_0 = arith.constant 0 : i32
    return %arg0, %c0_i32 : i32, i32
  }
}

</mosaic_0001>

<llo_original>
// kernel: tpu_custom_call.1
$region0: #{tpu_custom_call.1}
  #allocation0 [shape = 'u32[]', space=smem, size = 0x4, offset = 0x4, fixed_abs, tag = 'smem constant byte address 0x4 - core index']
  #allocation1 [shape = 'u32[144,128]{1,0:T(1,128)}', space=vmem, size = 0x12000, scoped, tag = 'internal scratch']
  #allocation2 [shape = 'f32[16,16]{1,0:T(8,128)}', space=vmem, size = 0x2000, scoped, tag = 'scratch operand']
  #allocation3 [shape = 's32[1]{0}', space=sflag, size = 0x4, scoped, tag = 'scoped memory for tpu_custom_call.1']
  #allocation4 [shape = 'u8[512]{0}', space=smem, size = 0x200, scoped, tag = 'prefetched SMEM operand 0']
  %s0 = inlined_call_operand.vmem [shape: s32[6], index: 0, kind: input, shape index: {}]
  %s1 = inlined_call_operand.vmem [shape: bf16[16,20], index: 1, kind: input, shape index: {}]
  %s2 = inlined_call_operand.vmem [shape: f32[16,2], index: 2, kind: input, shape index: {}]
  %s3 = inlined_call_operand.vmem [shape: bf16[6,20,256], index: 3, kind: input, shape index: {}]
  %s4 = inlined_call_operand.vmem [shape: f32[6,1,256], index: 4, kind: input, shape index: {}]
  %s5 = inlined_call_operand.hbm [shape: bf16[6,256,256], index: 5, kind: input, shape index: {}]
  %s6 = inlined_call_operand.vmem [shape: f32[6,1,256], index: 6, kind: input, shape index: {}]
  %s7 = inlined_call_operand.vmem [shape: bf16[6,256,16], index: 7, kind: input, shape index: {}]
  %s8 = inlined_call_operand.vmem [shape: f32[6,1,16], index: 8, kind: input, shape index: {}]
  %s9 = inlined_call_operand.vmem [shape: f32[16,1], index: 9, kind: output, shape index: {}]
  %s10 = sld [smem:[#allocation0]]
  $region81: #{tpu_custom_call.1} parent=0
    _
  %s12 = ssub.s32 1, %s10
  %s13 = scalar_select 0, %s12, %s10
  %s14 = sshll.u32 %s0, 4
  %s15 = int_to_ptr.vmem [resolvable:$true] %s14
  %17 = dma.vmem_to_smem %s15, 16, [#allocation4], [#allocation3]
  %18 = dma.done [#allocation3], 16
  %19 = sfence
  $region1: #{tpu_custom_call.1} parent=0
    #allocation5 [shape = 'u8[786432]{0}', space=vmem, size = 0xc0000, scoped, tag = 'input window, operand 5, single buffered']
    #allocation6 [shape = 's32[2]{0}', space=sflag, size = 0x8, scoped, tag = 'scoped memory for tpu_custom_call.1']
    %20 = vsyncpa [#allocation6], 0
    loop: start=0, step=1, limit=8
    $region2: #{tpu_custom_call.1} parent=1 // loop_pre_header
      _
    $region3: #{tpu_custom_call.1} parent=1 // loop_header
      %s22 = sphi 0, %s26
      %p23 = scmp.ge.s32.totalorder %s22, 8
      %s29 = sphi 0, %s41
      %s30 = sphi 0, %s37
      %s31 = sphi 0, %s29
      %s32 = sphi 0, %s30
      %s33 = sphi 0, %s31
      %s34 = sphi 0, %s32
      %s44 = sphi 0, %s46
      %s47 = sphi 0, %s44
      %s48 = sphi 0, %s47
      %s64 = sphi 0, %s48
      %s70 = sphi 0, %s72
      %s73 = sphi 0, %s70
      %s74 = sphi 0, %s73
      %s90 = sphi 0, %s74
      %s94 = sphi 0, %s94
      %s96 = sphi 0, %s94
      %s97 = sphi 0, %s96
      %s111 = sphi 0, %s97
      %s115 = sphi 0, %s115
      %s117 = sphi 0, %s115
      %s118 = sphi 0, %s117
      %s132 = sphi 0, %s118
      %s136 = sphi 0, %s136
      %s138 = sphi 0, %s136
      %s139 = sphi 0, %s138
      %s153 = sphi 0, %s139
      %s157 = sphi 0, %s157
      %s159 = sphi 0, %s157
      %s160 = sphi 0, %s159
      %s174 = sphi 0, %s160
      %s178 = sphi 0, %s178
      %s180 = sphi 0, %s178
      %s181 = sphi 0, %s180
      %s195 = sphi 0, %s181
      %s199 = sphi 0, %s199
      %s201 = sphi 0, %s199
      %s202 = sphi 0, %s201
      %s216 = sphi 0, %s202
      %s222 = sphi 0, %s224
      %s225 = sphi 0, %s222
      %s226 = sphi 0, %s225
      %s242 = sphi 0, %s226
    $region4: #{tpu_custom_call.1} parent=1 // loop_header_branch
      %25 = sbr.rel (%p23) target = $region8
    $region5: #{tpu_custom_call.1} parent=1 // loop_body
      %s27 = ssub.s32 %s22, 1
      %s28 = ssub.s32 %s22, 2
      %s35 = sadd.s32 1, %s30
      %p36 = scmp.ge.s32.totalorder %s35, 6
      %s37 = scalar_select %p36, 0, %s35
      %s38 = sadd.s32 1, %s29
      %s39 = scalar_select %p36, %s38, %s29
      %p40 = scmp.ge.s32.totalorder %s39, 1
      %s41 = scalar_select %p40, 0, %s39
      %s42 = ssub.s32 %s29, %s41
      %p43 = scmp.eq.s32.totalorder %s42, 0
      %s45 = sadd.s32 %s44, 1
      %s46 = scalar_select %p43, %s44, %s45
      %p49 = pneg %p43
      %p50 = scmp.eq.s32.totalorder %s22, 5
      %p51 = por %p49, %p50
      %p52 = scmp.ne.s32.totalorder %s44, %s47
      %p53 = scmp.eq.s32.totalorder %s22, 0
      %p54 = por %p52, %p53
      %p55 = scmp.ne.s32.totalorder %s44, %s47
      %p56 = scmp.eq.s32.totalorder %s27, 5
      %p57 = por %p55, %p56
      %p58 = scmp.ne.s32.totalorder %s47, %s48
      %p59 = scmp.eq.s32.totalorder %s27, 0
      %p60 = por %p58, %p59
      %p61 = scmp.ne.s32.totalorder %s47, %s48
      %p62 = scmp.eq.s32.totalorder %s28, 5
      %p63 = por %p61, %p62
      %p65 = scmp.ne.s32.totalorder %s48, %s64
      %p66 = scmp.eq.s32.totalorder %s28, 0
      %p67 = por %p65, %p66
      %s68 = ssub.s32 %s29, %s41
      %p69 = scmp.eq.s32.totalorder %s68, 0
      %s71 = sadd.s32 %s70, 1
      %s72 = scalar_select %p69, %s70, %s71
      %p75 = pneg %p69
      %p76 = scmp.eq.s32.totalorder %s22, 5
      %p77 = por %p75, %p76
      %p78 = scmp.ne.s32.totalorder %s70, %s73
      %p79 = scmp.eq.s32.totalorder %s22, 0
      %p80 = por %p78, %p79
      %p81 = scmp.ne.s32.totalorder %s70, %s73
      %p82 = scmp.eq.s32.totalorder %s27, 5
      %p83 = por %p81, %p82
      %p84 = scmp.ne.s32.totalorder %s73, %s74
      %p85 = scmp.eq.s32.totalorder %s27, 0
      %p86 = por %p84, %p85
      %p87 = scmp.ne.s32.totalorder %s73, %s74
      %p88 = scmp.eq.s32.totalorder %s28, 5
      %p89 = por %p87, %p88
      %p91 = scmp.ne.s32.totalorder %s74, %s90
      %p92 = scmp.eq.s32.totalorder %s28, 0
      %p93 = por %p91, %p92
      %s95 = sadd.s32 %s94, 1
      %p98 = scmp.eq.s32.totalorder %s22, 5
      %p99 = scmp.ne.s32.totalorder %s94, %s96
      %p100 = scmp.eq.s32.totalorder %s22, 0
      %p101 = por %p99, %p100
      %p102 = scmp.ne.s32.totalorder %s94, %s96
      %p103 = scmp.eq.s32.totalorder %s27, 5
      %p104 = por %p102, %p103
      %p105 = scmp.ne.s32.totalorder %s96, %s97
      %p106 = scmp.eq.s32.totalorder %s27, 0
      %p107 = por %p105, %p106
      %p108 = scmp.ne.s32.totalorder %s96, %s97
      %p109 = scmp.eq.s32.totalorder %s28, 5
      %p110 = por %p108, %p109
      %p112 = scmp.ne.s32.totalorder %s97, %s111
      %p113 = scmp.eq.s32.totalorder %s28, 0
      %p114 = por %p112, %p113
      %s116 = sadd.s32 %s115, 1
      %p119 = scmp.eq.s32.totalorder %s22, 5
      %p120 = scmp.ne.s32.totalorder %s115, %s117
      %p121 = scmp.eq.s32.totalorder %s22, 0
      %p122 = por %p120, %p121
      %p123 = scmp.ne.s32.totalorder %s115, %s117
      %p124 = scmp.eq.s32.totalorder %s27, 5
      %p125 = por %p123, %p124
      %p126 = scmp.ne.s32.totalorder %s117, %s118
      %p127 = scmp.eq.s32.totalorder %s27, 0
      %p128 = por %p126, %p127
      %p129 = scmp.ne.s32.totalorder %s117, %s118
      %p130 = scmp.eq.s32.totalorder %s28, 5
      %p131 = por %p129, %p130
      %p133 = scmp.ne.s32.totalorder %s118, %s132
      %p134 = scmp.eq.s32.totalorder %s28, 0
      %p135 = por %p133, %p134
      %s137 = sadd.s32 %s136, 1
      %p140 = scmp.eq.s32.totalorder %s22, 5
      %p141 = scmp.ne.s32.totalorder %s136, %s138
      %p142 = scmp.eq.s32.totalorder %s22, 0
      %p143 = por %p141, %p142
      %p144 = scmp.ne.s32.totalorder %s136, %s138
      %p145 = scmp.eq.s32.totalorder %s27, 5
      %p146 = por %p144, %p145
      %p147 = scmp.ne.s32.totalorder %s138, %s139
      %p148 = scmp.eq.s32.totalorder %s27, 0
      %p149 = por %p147, %p148
      %p150 = scmp.ne.s32.totalorder %s138, %s139
      %p151 = scmp.eq.s32.totalorder %s28, 5
      %p152 = por %p150, %p151
      %p154 = scmp.ne.s32.totalorder %s139, %s153
      %p155 = scmp.eq.s32.totalorder %s28, 0
      %p156 = por %p154, %p155
      %s158 = sadd.s32 %s157, 1
      %p161 = scmp.eq.s32.totalorder %s22, 5
      %p162 = scmp.ne.s32.totalorder %s157, %s159
      %p163 = scmp.eq.s32.totalorder %s22, 0
      %p164 = por %p162, %p163
      %p165 = scmp.ne.s32.totalorder %s157, %s159
      %p166 = scmp.eq.s32.totalorder %s27, 5
      %p167 = por %p165, %p166
      %p168 = scmp.ne.s32.totalorder %s159, %s160
      %p169 = scmp.eq.s32.totalorder %s27, 0
      %p170 = por %p168, %p169
      %p171 = scmp.ne.s32.totalorder %s159, %s160
      %p172 = scmp.eq.s32.totalorder %s28, 5
      %p173 = por %p171, %p172
      %p175 = scmp.ne.s32.totalorder %s160, %s174
      %p176 = scmp.eq.s32.totalorder %s28, 0
      %p177 = por %p175, %p176
      %s179 = sadd.s32 %s178, 1
      %p182 = scmp.eq.s32.totalorder %s22, 5
      %p183 = scmp.ne.s32.totalorder %s178, %s180
      %p184 = scmp.eq.s32.totalorder %s22, 0
      %p185 = por %p183, %p184
      %p186 = scmp.ne.s32.totalorder %s178, %s180
      %p187 = scmp.eq.s32.totalorder %s27, 5
      %p188 = por %p186, %p187
      %p189 = scmp.ne.s32.totalorder %s180, %s181
      %p190 = scmp.eq.s32.totalorder %s27, 0
      %p191 = por %p189, %p190
      %p192 = scmp.ne.s32.totalorder %s180, %s181
      %p193 = scmp.eq.s32.totalorder %s28, 5
      %p194 = por %p192, %p193
      %p196 = scmp.ne.s32.totalorder %s181, %s195
      %p197 = scmp.eq.s32.totalorder %s28, 0
      %p198 = por %p196, %p197
      %s200 = sadd.s32 %s199, 1
      %p203 = scmp.eq.s32.totalorder %s22, 5
      %p204 = scmp.ne.s32.totalorder %s199, %s201
      %p205 = scmp.eq.s32.totalorder %s22, 0
      %p206 = por %p204, %p205
      %p207 = scmp.ne.s32.totalorder %s199, %s201
      %p208 = scmp.eq.s32.totalorder %s27, 5
      %p209 = por %p207, %p208
      %p210 = scmp.ne.s32.totalorder %s201, %s202
      %p211 = scmp.eq.s32.totalorder %s27, 0
      %p212 = por %p210, %p211
      %p213 = scmp.ne.s32.totalorder %s201, %s202
      %p214 = scmp.eq.s32.totalorder %s28, 5
      %p215 = por %p213, %p214
      %p217 = scmp.ne.s32.totalorder %s202, %s216
      %p218 = scmp.eq.s32.totalorder %s28, 0
      %p219 = por %p217, %p218
      %s220 = ssub.s32 %s29, %s41
      %p221 = scmp.eq.s32.totalorder %s220, 0
      %s223 = sadd.s32 %s222, 1
      %s224 = scalar_select %p221, %s222, %s223
      %p227 = pneg %p221
      %p228 = scmp.eq.s32.totalorder %s22, 5
      %p229 = por %p227, %p228
      %p230 = scmp.ne.s32.totalorder %s222, %s225
      %p231 = scmp.eq.s32.totalorder %s22, 0
      %p232 = por %p230, %p231
      %p233 = scmp.ne.s32.totalorder %s222, %s225
      %p234 = scmp.eq.s32.totalorder %s27, 5
      %p235 = por %p233, %p234
      %p236 = scmp.ne.s32.totalorder %s225, %s226
      %p237 = scmp.eq.s32.totalorder %s27, 0
      %p238 = por %p236, %p237
      %p239 = scmp.ne.s32.totalorder %s225, %s226
      %p240 = scmp.eq.s32.totalorder %s28, 5
      %p241 = por %p239, %p240
      %p243 = scmp.ne.s32.totalorder %s226, %s242
      %p244 = scmp.eq.s32.totalorder %s28, 0
      %p245 = por %p243, %p244
      %p246 = scmp.le.s32.totalorder 1, %s22
      %p247 = scmp.lt.s32.totalorder %s22, 7
      %p248 = pnand %p246, %p247
      %p249 = pneg %p248
      // Predicated region
      $region9: #{tpu_custom_call.1} parent=5 // pred_check
        _
      $region10: #{tpu_custom_call.1} parent=5 // pred_check_branch
        %251 = sbr.rel (%p248) target = $region12
      $region11: #{tpu_custom_call.1} parent=5 // pred_region
        %s252 = ssub.s32 %s22, 1
        // Predicated region
        $region13: #{tpu_custom_call.1} parent=11 // pred_check
          %p253 = pneg %p60
        $region14: #{tpu_custom_call.1} parent=11 // pred_check_branch
          %255 = sbr.rel (%p253) target = $region16
        $region15: #{tpu_custom_call.1} parent=11 // pred_region
          %s256 = smul.u32 2, %s31
          %p257 = scmp.lt.s32.totalorder %s256, 1
          %s258 = scalar_select %p257, %s256, 1
          %s259 = smul.addr %s258, 4
          %s260 = scalar_lea.vmem %s1, %s259
          %s261 = smul.u32 2, %s31
        $region16: #{tpu_custom_call.1} parent=11 // pred_fallthru
          _
        // Predicated region
        $region17: #{tpu_custom_call.1} parent=11 // pred_check
          %p262 = pneg %p86
        $region18: #{tpu_custom_call.1} parent=11 // pred_check_branch
          %264 = sbr.rel (%p262) target = $region20
        $region19: #{tpu_custom_call.1} parent=11 // pred_region
          %s265 = smul.u32 2, %s31
          %p266 = scmp.lt.s32.totalorder %s265, 1
          %s267 = scalar_select %p266, %s265, 1
          %s268 = smul.addr %s267, 8
          %s269 = scalar_lea.vmem %s2, %s268
          %s270 = smul.u32 2, %s31
        $region20: #{tpu_custom_call.1} parent=11 // pred_fallthru
          _
        // Predicated region
        $region21: #{tpu_custom_call.1} parent=11 // pred_check
          %p271 = pneg %p107
        $region22: #{tpu_custom_call.1} parent=11 // pred_check_branch
          %273 = sbr.rel (%p271) target = $region24
        $region23: #{tpu_custom_call.1} parent=11 // pred_region
          _
        $region24: #{tpu_custom_call.1} parent=11 // pred_fallthru
          _
        // Predicated region
        $region25: #{tpu_custom_call.1} parent=11 // pred_check
          %p274 = pneg %p128
        $region26: #{tpu_custom_call.1} parent=11 // pred_check_branch
          %276 = sbr.rel (%p274) target = $region28
        $region27: #{tpu_custom_call.1} parent=11 // pred_region
          _
        $region28: #{tpu_custom_call.1} parent=11 // pred_fallthru
          _
        // Predicated region
        $region29: #{tpu_custom_call.1} parent=11 // pred_check
          %p277 = pneg %p149
        $region30: #{tpu_custom_call.1} parent=11 // pred_check_branch
          %279 = sbr.rel (%p277) target = $region32
        $region31: #{tpu_custom_call.1} parent=11 // pred_region
          %s281 = ssub.s32 24576, 24576
          %282 = vsyncadd [#allocation6], %s281
          %s283 = sshll.u32 [#allocation5], 4
          %s284 = int_to_ptr.vmem [resolvable:$true] %s283
          %289 = dma.hbm_to_vmem [thread:$0]  %s5, 24576, %s284, [#allocation6], 128, 128, 8
        $region32: #{tpu_custom_call.1} parent=11 // pred_fallthru
          _
        // Predicated region
        $region33: #{tpu_custom_call.1} parent=11 // pred_check
          %p290 = pneg %p170
        $region34: #{tpu_custom_call.1} parent=11 // pred_check_branch
          %292 = sbr.rel (%p290) target = $region36
        $region35: #{tpu_custom_call.1} parent=11 // pred_region
          _
        $region36: #{tpu_custom_call.1} parent=11 // pred_fallthru
          _
        // Predicated region
        $region37: #{tpu_custom_call.1} parent=11 // pred_check
          %p293 = pneg %p191
        $region38: #{tpu_custom_call.1} parent=11 // pred_check_branch
          %295 = sbr.rel (%p293) target = $region40
        $region39: #{tpu_custom_call.1} parent=11 // pred_region
          _
        $region40: #{tpu_custom_call.1} parent=11 // pred_fallthru
          _
        // Predicated region
        $region41: #{tpu_custom_call.1} parent=11 // pred_check
          %p296 = pneg %p212
        $region42: #{tpu_custom_call.1} parent=11 // pred_check_branch
          %298 = sbr.rel (%p296) target = $region44
        $region43: #{tpu_custom_call.1} parent=11 // pred_region
          _
        $region44: #{tpu_custom_call.1} parent=11 // pred_fallthru
          _
      $region12: #{tpu_custom_call.1} parent=5 // pred_fallthru
        _
      %p299 = scmp.lt.s32.totalorder %s22, 6
      // Predicated region
      $region45: #{tpu_custom_call.1} parent=5 // pred_check
        %p300 = pneg %p299
      $region46: #{tpu_custom_call.1} parent=5 // pred_check_branch
        %302 = sbr.rel (%p300) target = $region48
      $region47: #{tpu_custom_call.1} parent=5 // pred_region
        _
      $region48: #{tpu_custom_call.1} parent=5 // pred_fallthru
        _
      %p303 = scmp.le.s32.totalorder 1, %s22
      %p304 = scmp.lt.s32.totalorder %s22, 7
      %p305 = pnand %p303, %p304
      %p306 = pneg %p305
      // Predicated region
      $region49: #{tpu_custom_call.1} parent=5 // pred_check
        _
      $region50: #{tpu_custom_call.1} parent=5 // pred_check_branch
        %308 = sbr.rel (%p305) target = $region52
      $region51: #{tpu_custom_call.1} parent=5 // pred_region
        %s309 = ssub.s32 %s22, 1
        // Predicated region
        $region53: #{tpu_custom_call.1} parent=51 // pred_check
          %p310 = pneg %p149
        $region54: #{tpu_custom_call.1} parent=51 // pred_check_branch
          %312 = sbr.rel (%p310) target = $region56
        $region55: #{tpu_custom_call.1} parent=51 // pred_region
          %313 = dma.done [#allocation6], 24576
        $region56: #{tpu_custom_call.1} parent=51 // pred_fallthru
          _
        %s314 = smul.u32 2, %s31
        %p315 = scmp.lt.s32.totalorder %s314, 1
        %s316 = scalar_select %p315, %s314, 1
        %s317 = smul.addr %s316, 4
        %s318 = scalar_lea.vmem %s1, %s317
        %p319 = pneg %p60
        %p320 = pneg %p57
        %s321 = smul.u32 2, %s31
        %p322 = scmp.lt.s32.totalorder %s321, 1
        %s323 = scalar_select %p322, %s321, 1
        %s324 = smul.addr %s323, 8
        %s325 = scalar_lea.vmem %s2, %s324
        %p326 = pneg %p86
        %p327 = pneg %p83
        %p328 = pneg %p107
        %p329 = pneg %p104
        %p330 = pneg %p128
        %p331 = pneg %p125
        %p332 = pneg %p149
        %p333 = pneg %p146
        %p334 = pneg %p170
        %p335 = pneg %p167
        %p336 = pneg %p191
        %p337 = pneg %p188
        %p338 = pneg %p212
        %p339 = pneg %p209
        %p340 = pneg %p238
        %p341 = pneg %p235
        %s342 = smul.u32 2, %s31
        %p343 = scmp.lt.s32.totalorder %s342, 1
        %s344 = scalar_select %p343, %s342, 1
        %s345 = smul.addr %s344, 8
        %s346 = scalar_lea.vmem %s9, %s345
        %s347 = smul.u32 2, %s31
        %p348 = scmp.lt.s32.totalorder %s347, 1
        %s349 = scalar_select %p348, %s347, 1
        %s350 = smul.addr %s349, 4
        %s351 = scalar_lea.vmem %s1, %s350
        %s352 = smul.u32 2, %s31
        %s353 = smul.u32 2, %s31
        %p354 = scmp.lt.s32.totalorder %s353, 1
        %s355 = scalar_select %p354, %s353, 1
        %s356 = smul.addr %s355, 8
        %s357 = scalar_lea.vmem %s2, %s356
        %s358 = smul.u32 2, %s31
        %s359 = smul.u32 2, %s31
        %p360 = scmp.lt.s32.totalorder %s359, 1
        %s361 = scalar_select %p360, %s359, 1
        %s362 = smul.addr %s361, 8
        %s363 = scalar_lea.vmem %s9, %s362
        %s364 = smul.u32 2, %s31
        %p366 = scmp.eq.s32.totalorder %s32, 0
        // Predicated region
        $region57: #{tpu_custom_call.1} parent=51 // pred_check
          %p367 = pneg %p366
        $region58: #{tpu_custom_call.1} parent=51 // pred_check_branch
          %369 = sbr.rel (%p367) target = $region60
        $region59: #{tpu_custom_call.1} parent=51 // pred_region
          %vm370 = vcmask 130048
          %371 = vst.msk [vmem:[#allocation2] sm:$0xff] %vm370, 0.0
          %372 = vst.msk [vmem:[#allocation2 + $0x8] sm:$0xff] %vm370, 0.0
        $region60: #{tpu_custom_call.1} parent=51 // pred_fallthru
          _
        %s373 = sld [smem:[#allocation4 + %s32]]
        %p374 = scmp.ge.s32.totalorder %s373, 0
        // Predicated region
        $region61: #{tpu_custom_call.1} parent=51 // pred_check
          %p375 = pneg %p374
        $region62: #{tpu_custom_call.1} parent=51 // pred_check_branch
          %377 = sbr.rel (%p375) target = $region64
        $region63: #{tpu_custom_call.1} parent=51 // pred_region
          %v378 = vld [vmem:[%s351] sm:$0xf]
          %v379 = vld [vmem:[%s351 + $0x4] sm:$0xf]
          %s380 = smul.u32 %s373, 6
          %s381 = smul.addr %s380, 4
          %s382 = scalar_lea.vmem %s3, %s381
          %v383 = vld [vmem:[%s382] sm:$0xff]
          %v384 = vld [vmem:[%s382 + $0x8] sm:$0xff]
          %v385 = vld [vmem:[%s382 + $0x10] sm:$0x33]
          %s386 = smul.u32 %s373, 2
          %s387 = scalar_lea.vmem %s4, %s386
          %v388 = vld [vmem:[%s387] sm:$0x3]
          %v390 = vlaneseq
          %v391 = vshrl.u32 %v390, 7
          %v392 = vsub.s32 0, %v391
          %v393 = vrot.slane %v388, %v392
          %v394 = vlaneseq
          %v395 = vshrl.u32 %v394, 7
          %v396 = vsub.s32 1, %v395
          %v397 = vrot.slane %v388, %v396
          %v402 = vunpack.c.l.b16 %v378
          %v403 = vunpack.c.l.b16 %v379
          %v404 = vpack.c.b16 %v403, %v402
          %v408 = vunpack.c.l.b16 %v383
          %v409 = vunpack.c.h.b16 %v383
          %v410 = vunpack.c.l.b16 %v384
          %v411 = vunpack.c.h.b16 %v384
          %v412 = vunpack.c.l.b16 %v385
          %v413 = vunpack.c.h.b16 %v385
          %v414 = vpack.c.b16 %v410, %v408
          %v415 = vpack.c.b16 %v411, %v409
          %v416 = vpack.c.b16 %v412, %v412
          %v417 = vpack.c.b16 %v413, %v413
          %vm420 = vcmask 162816
          %v422 = vsel %vm420, %v404, 0
          %vm424 = vcmask 1041408
          %v426 = vsel %vm424, %v416, 0
          %v429 = vsel %vm424, %v417, 0
          %431 = vmatprep.subr.bf16.mxu0 0
          %432 = vmatpush1.bf16.msra.mxu0 0
          %433 = vmatprep.subr.bf16.mxu0 0
          %434 = vmatpush1.bf16.msra.mxu0 0
          %435 = vmatprep.subr.bf16.mxu0 0
          %436 = vmatpush1.bf16.msra.mxu0 0
          %437 = vmatprep.subr.bf16.mxu0 0
          %438 = vmatpush1.bf16.msra.mxu0 0
          %439 = vmatprep.subr.bf16.mxu0 0
          %440 = vmatpush1.bf16.msra.mxu0 0
          %441 = vmatprep.subr.bf16.mxu0 0
          %442 = vmatpush1.bf16.msra.mxu0 0
          %443 = vmatprep.subr.bf16.mxu0 %v429
          %444 = vmatpush1.bf16.msra.mxu0 %v426
          %445 = vmatprep.subr.bf16.mxu0 %v415
          %446 = vmatpush1.bf16.msra.mxu0 %v414
          %447 = vmatprep.subr.bf16.mxu0 0
          %448 = vmatpush2.bf16.msra.mxu0 0
          %449 = vmatprep.subr.bf16.mxu0 0
          %450 = vmatpush2.bf16.msra.mxu0 0
          %451 = vmatprep.subr.bf16.mxu0 0
          %452 = vmatpush2.bf16.msra.mxu0 0
          %453 = vmatprep.subr.bf16.mxu0 0
          %454 = vmatpush2.bf16.msra.mxu0 0
          %455 = vmatprep.subr.bf16.mxu0 0
          %456 = vmatpush2.bf16.msra.mxu0 0
          %457 = vmatprep.subr.bf16.mxu0 0
          %458 = vmatpush2.bf16.msra.mxu0 0
          %459 = vmatprep.subr.bf16.mxu0 0
          %460 = vmatpush2.bf16.msra.mxu0 0
          %461 = vmatprep.subr.bf16.mxu0 0
          %462 = vmatpush2.bf16.msra.mxu0 0
          %463 = vmatprep.mubr.bf16.mxu0 0
          %464 = vmatmul.mubr.bf16.gmra.mxu0 %v422
          %v465 = vpop.f32.mrf.mxu0
          %v466 = vadd.f32 %v393, %v465
          %v467 = vpop.f32.mrf.mxu0
          %v468 = vadd.f32 %v397, %v467
          %v469 = vpop.f32.mrf.mxu0
          %v470 = vadd.f32 %v393, %v469
          %v471 = vpop.f32.mrf.mxu0
          %v472 = vadd.f32 %v397, %v471
          %473 = vdwg.mxu0
          %v474 = vmax.f32 %v466, 0.0
          %v475 = vmax.f32 %v468, 0.0
          %v476 = vmax.f32 %v470, 0.0
          %v477 = vmax.f32 %v472, 0.0
          %v478 = vpack.c.bf16 %v476, %v474
          %v479 = vpack.c.bf16 %v477, %v475
          %s480 = smul.u32 %s373, 64
          %s481 = smul.addr %s480, 4
          %s482 = scalar_lea.vmem [#allocation5], %s481
          %v483 = vld [vmem:[%s482] sm:$0xff]
          %v484 = vld [vmem:[%s482 + $0x8] sm:$0xff]
          %v485 = vld [vmem:[%s482 + $0x10] sm:$0xff]
          %v486 = vld [vmem:[%s482 + $0x18] sm:$0xff]
          %v487 = vld [vmem:[%s482 + $0x20] sm:$0xff]
          %v488 = vld [vmem:[%s482 + $0x28] sm:$0xff]
          %v489 = vld [vmem:[%s482 + $0x30] sm:$0xff]
          %v490 = vld [vmem:[%s482 + $0x38] sm:$0xff]
          %v491 = vld [vmem:[%s482 + $0x40] sm:$0xff]
          %v492 = vld [vmem:[%s482 + $0x48] sm:$0xff]
          %v493 = vld [vmem:[%s482 + $0x50] sm:$0xff]
          %v494 = vld [vmem:[%s482 + $0x58] sm:$0xff]
          %v495 = vld [vmem:[%s482 + $0x60] sm:$0xff]
          %v496 = vld [vmem:[%s482 + $0x68] sm:$0xff]
          %v497 = vld [vmem:[%s482 + $0x70] sm:$0xff]
          %v498 = vld [vmem:[%s482 + $0x78] sm:$0xff]
          %v499 = vld [vmem:[%s482 + $0x80] sm:$0xff]
          %v500 = vld [vmem:[%s482 + $0x88] sm:$0xff]
          %v501 = vld [vmem:[%s482 + $0x90] sm:$0xff]
          %v502 = vld [vmem:[%s482 + $0x98] sm:$0xff]
          %v503 = vld [vmem:[%s482 + $0xa0] sm:$0xff]
          %v504 = vld [vmem:[%s482 + $0xa8] sm:$0xff]
          %v505 = vld [vmem:[%s482 + $0xb0] sm:$0xff]
          %v506 = vld [vmem:[%s482 + $0xb8] sm:$0xff]
          %v507 = vld [vmem:[%s482 + $0xc0] sm:$0xff]
          %v508 = vld [vmem:[%s482 + $0xc8] sm:$0xff]
          %v509 = vld [vmem:[%s482 + $0xd0] sm:$0xff]
          %v510 = vld [vmem:[%s482 + $0xd8] sm:$0xff]
          %v511 = vld [vmem:[%s482 + $0xe0] sm:$0xff]
          %v512 = vld [vmem:[%s482 + $0xe8] sm:$0xff]
          %v513 = vld [vmem:[%s482 + $0xf0] sm:$0xff]
          %v514 = vld [vmem:[%s482 + $0xf8] sm:$0xff]
          %s515 = scalar_lea.vmem %s6, %s386
          %v516 = vld [vmem:[%s515] sm:$0x3]
          %v518 = vlaneseq
          %v519 = vshrl.u32 %v518, 7
          %v520 = vsub.s32 0, %v519
          %v521 = vrot.slane %v516, %v520
          %v522 = vlaneseq
          %v523 = vshrl.u32 %v522, 7
          %v524 = vsub.s32 1, %v523
          %v525 = vrot.slane %v516, %v524
          %v560 = vunpack.c.l.b16 %v483
          %v561 = vunpack.c.h.b16 %v483
          %v562 = vunpack.c.l.b16 %v484
          %v563 = vunpack.c.h.b16 %v484
          %v564 = vunpack.c.l.b16 %v485
          %v565 = vunpack.c.h.b16 %v485
          %v566 = vunpack.c.l.b16 %v486
          %v567 = vunpack.c.h.b16 %v486
          %v568 = vunpack.c.l.b16 %v487
          %v569 = vunpack.c.h.b16 %v487
          %v570 = vunpack.c.l.b16 %v488
          %v571 = vunpack.c.h.b16 %v488
          %v572 = vunpack.c.l.b16 %v489
          %v573 = vunpack.c.h.b16 %v489
          %v574 = vunpack.c.l.b16 %v490
          %v575 = vunpack.c.h.b16 %v490
          %v576 = vunpack.c.l.b16 %v491
          %v577 = vunpack.c.h.b16 %v491
          %v578 = vunpack.c.l.b16 %v492
          %v579 = vunpack.c.h.b16 %v492
          %v580 = vunpack.c.l.b16 %v493
          %v581 = vunpack.c.h.b16 %v493
          %v582 = vunpack.c.l.b16 %v494
          %v583 = vunpack.c.h.b16 %v494
          %v584 = vunpack.c.l.b16 %v495
          %v585 = vunpack.c.h.b16 %v495
          %v586 = vunpack.c.l.b16 %v496
          %v587 = vunpack.c.h.b16 %v496
          %v588 = vunpack.c.l.b16 %v497
          %v589 = vunpack.c.h.b16 %v497
          %v590 = vunpack.c.l.b16 %v498
          %v591 = vunpack.c.h.b16 %v498
          %v592 = vunpack.c.l.b16 %v499
          %v593 = vunpack.c.h.b16 %v499
          %v594 = vunpack.c.l.b16 %v500
          %v595 = vunpack.c.h.b16 %v500
          %v596 = vunpack.c.l.b16 %v501
          %v597 = vunpack.c.h.b16 %v501
          %v598 = vunpack.c.l.b16 %v502
          %v599 = vunpack.c.h.b16 %v502
          %v600 = vunpack.c.l.b16 %v503
          %v601 = vunpack.c.h.b16 %v503
          %v602 = vunpack.c.l.b16 %v504
          %v603 = vunpack.c.h.b16 %v504
          %v604 = vunpack.c.l.b16 %v505
          %v605 = vunpack.c.h.b16 %v505
          %v606 = vunpack.c.l.b16 %v506
          %v607 = vunpack.c.h.b16 %v506
          %v608 = vunpack.c.l.b16 %v507
          %v609 = vunpack.c.h.b16 %v507
          %v610 = vunpack.c.l.b16 %v508
          %v611 = vunpack.c.h.b16 %v508
          %v612 = vunpack.c.l.b16 %v509
          %v613 = vunpack.c.h.b16 %v509
          %v614 = vunpack.c.l.b16 %v510
          %v615 = vunpack.c.h.b16 %v510
          %v616 = vunpack.c.l.b16 %v511
          %v617 = vunpack.c.h.b16 %v511
          %v618 = vunpack.c.l.b16 %v512
          %v619 = vunpack.c.h.b16 %v512
          %v620 = vunpack.c.l.b16 %v513
          %v621 = vunpack.c.h.b16 %v513
          %v622 = vunpack.c.l.b16 %v514
          %v623 = vunpack.c.h.b16 %v514
          %v624 = vpack.c.b16 %v562, %v560
          %v625 = vpack.c.b16 %v563, %v561
          %v626 = vpack.c.b16 %v566, %v564
          %v627 = vpack.c.b16 %v567, %v565
          %v628 = vpack.c.b16 %v570, %v568
          %v629 = vpack.c.b16 %v571, %v569
          %v630 = vpack.c.b16 %v574, %v572
          %v631 = vpack.c.b16 %v575, %v573
          %v632 = vpack.c.b16 %v578, %v576
          %v633 = vpack.c.b16 %v579, %v577
          %v634 = vpack.c.b16 %v582, %v580
          %v635 = vpack.c.b16 %v583, %v581
          %v636 = vpack.c.b16 %v586, %v584
          %v637 = vpack.c.b16 %v587, %v585
          %v638 = vpack.c.b16 %v590, %v588
          %v639 = vpack.c.b16 %v591, %v589
          %v640 = vpack.c.b16 %v594, %v592
          %v641 = vpack.c.b16 %v595, %v593
          %v642 = vpack.c.b16 %v598, %v596
          %v643 = vpack.c.b16 %v599, %v597
          %v644 = vpack.c.b16 %v602, %v600
          %v645 = vpack.c.b16 %v603, %v601
          %v646 = vpack.c.b16 %v606, %v604
          %v647 = vpack.c.b16 %v607, %v605
          %v648 = vpack.c.b16 %v610, %v608
          %v649 = vpack.c.b16 %v611, %v609
          %v650 = vpack.c.b16 %v614, %v612
          %v651 = vpack.c.b16 %v615, %v613
          %v652 = vpack.c.b16 %v618, %v616
          %v653 = vpack.c.b16 %v619, %v617
          %v654 = vpack.c.b16 %v622, %v620
          %v655 = vpack.c.b16 %v623, %v621
          %688 = vmatprep.subr.bf16.mxu0 %v639
          %689 = vmatpush1.bf16.msra.mxu0 %v638
          %690 = vmatprep.subr.bf16.mxu0 %v637
          %691 = vmatpush1.bf16.msra.mxu0 %v636
          %692 = vmatprep.subr.bf16.mxu0 %v635
          %693 = vmatpush1.bf16.msra.mxu0 %v634
          %694 = vmatprep.subr.bf16.mxu0 %v633
          %695 = vmatpush1.bf16.msra.mxu0 %v632
          %696 = vmatprep.subr.bf16.mxu0 %v631
          %697 = vmatpush1.bf16.msra.mxu0 %v630
          %698 = vmatprep.subr.bf16.mxu0 %v629
          %699 = vmatpush1.bf16.msra.mxu0 %v628
          %700 = vmatprep.subr.bf16.mxu0 %v627
          %701 = vmatpush1.bf16.msra.mxu0 %v626
          %702 = vmatprep.subr.bf16.mxu0 %v625
          %703 = vmatpush1.bf16.msra.mxu0 %v624
          %704 = vmatprep.subr.bf16.mxu0 %v655
          %705 = vmatpush2.bf16.msra.mxu0 %v654
          %706 = vmatprep.subr.bf16.mxu0 %v653
          %707 = vmatpush2.bf16.msra.mxu0 %v652
          %708 = vmatprep.subr.bf16.mxu0 %v651
          %709 = vmatpush2.bf16.msra.mxu0 %v650
          %710 = vmatprep.subr.bf16.mxu0 %v649
          %711 = vmatpush2.bf16.msra.mxu0 %v648
          %712 = vmatprep.subr.bf16.mxu0 %v647
          %713 = vmatpush2.bf16.msra.mxu0 %v646
          %714 = vmatprep.subr.bf16.mxu0 %v645
          %715 = vmatpush2.bf16.msra.mxu0 %v644
          %716 = vmatprep.subr.bf16.mxu0 %v643
          %717 = vmatpush2.bf16.msra.mxu0 %v642
          %718 = vmatprep.subr.bf16.mxu0 %v641
          %719 = vmatpush2.bf16.msra.mxu0 %v640
          %720 = vmatprep.mubr.bf16.mxu0 %v479
          %721 = vmatmul.mubr.bf16.gmra.mxu0 %v478
          %v722 = vpop.f32.mrf.mxu0
          %v723 = vadd.f32 %v521, %v722
          %v724 = vpop.f32.mrf.mxu0
          %v725 = vadd.f32 %v525, %v724
          %v726 = vpop.f32.mrf.mxu0
          %v727 = vadd.f32 %v521, %v726
          %v728 = vpop.f32.mrf.mxu0
          %v729 = vadd.f32 %v525, %v728
          %730 = vdwg.mxu0
          %v731 = vmax.f32 %v723, 0.0
          %v732 = vmax.f32 %v725, 0.0
          %v733 = vmax.f32 %v727, 0.0
          %v734 = vmax.f32 %v729, 0.0
          %v735 = vpack.c.bf16 %v733, %v731
          %v736 = vpack.c.bf16 %v734, %v732
          %s737 = smul.u32 %s373, 32
          %s738 = smul.addr %s737, 4
          %s739 = scalar_lea.vmem %s7, %s738
          %v740 = vld [vmem:[%s739] sm:$0xf]
          %v741 = vld [vmem:[%s739 + $0x4] sm:$0xf]
          %v742 = vld [vmem:[%s739 + $0x8] sm:$0xf]
          %v743 = vld [vmem:[%s739 + $0xc] sm:$0xf]
          %v744 = vld [vmem:[%s739 + $0x10] sm:$0xf]
          %v745 = vld [vmem:[%s739 + $0x14] sm:$0xf]
          %v746 = vld [vmem:[%s739 + $0x18] sm:$0xf]
          %v747 = vld [vmem:[%s739 + $0x1c] sm:$0xf]
          %v748 = vld [vmem:[%s739 + $0x20] sm:$0xf]
          %v749 = vld [vmem:[%s739 + $0x24] sm:$0xf]
          %v750 = vld [vmem:[%s739 + $0x28] sm:$0xf]
          %v751 = vld [vmem:[%s739 + $0x2c] sm:$0xf]
          %v752 = vld [vmem:[%s739 + $0x30] sm:$0xf]
          %v753 = vld [vmem:[%s739 + $0x34] sm:$0xf]
          %v754 = vld [vmem:[%s739 + $0x38] sm:$0xf]
          %v755 = vld [vmem:[%s739 + $0x3c] sm:$0xf]
          %v756 = vld [vmem:[%s739 + $0x40] sm:$0xf]
          %v757 = vld [vmem:[%s739 + $0x44] sm:$0xf]
          %v758 = vld [vmem:[%s739 + $0x48] sm:$0xf]
          %v759 = vld [vmem:[%s739 + $0x4c] sm:$0xf]
          %v760 = vld [vmem:[%s739 + $0x50] sm:$0xf]
          %v761 = vld [vmem:[%s739 + $0x54] sm:$0xf]
          %v762 = vld [vmem:[%s739 + $0x58] sm:$0xf]
          %v763 = vld [vmem:[%s739 + $0x5c] sm:$0xf]
          %v764 = vld [vmem:[%s739 + $0x60] sm:$0xf]
          %v765 = vld [vmem:[%s739 + $0x64] sm:$0xf]
          %v766 = vld [vmem:[%s739 + $0x68] sm:$0xf]
          %v767 = vld [vmem:[%s739 + $0x6c] sm:$0xf]
          %v768 = vld [vmem:[%s739 + $0x70] sm:$0xf]
          %v769 = vld [vmem:[%s739 + $0x74] sm:$0xf]
          %v770 = vld [vmem:[%s739 + $0x78] sm:$0xf]
          %v771 = vld [vmem:[%s739 + $0x7c] sm:$0xf]
          %s772 = scalar_lea.vmem %s8, %s373
          %v773 = vld [vmem:[%s772] sm:$0x1]
          %v775 = vlaneseq
          %v776 = vshrl.u32 %v775, 7
          %v777 = vsub.s32 0, %v776
          %v778 = vrot.slane %v773, %v777
          %v812 = vunpack.c.l.b16 %v740
          %v813 = vunpack.c.l.b16 %v741
          %v814 = vunpack.c.l.b16 %v742
          %v815 = vunpack.c.l.b16 %v743
          %v816 = vunpack.c.l.b16 %v744
          %v817 = vunpack.c.l.b16 %v745
          %v818 = vunpack.c.l.b16 %v746
          %v819 = vunpack.c.l.b16 %v747
          %v820 = vunpack.c.l.b16 %v748
          %v821 = vunpack.c.l.b16 %v749
          %v822 = vunpack.c.l.b16 %v750
          %v823 = vunpack.c.l.b16 %v751
          %v824 = vunpack.c.l.b16 %v752
          %v825 = vunpack.c.l.b16 %v753
          %v826 = vunpack.c.l.b16 %v754
          %v827 = vunpack.c.l.b16 %v755
          %v828 = vunpack.c.l.b16 %v756
          %v829 = vunpack.c.l.b16 %v757
          %v830 = vunpack.c.l.b16 %v758
          %v831 = vunpack.c.l.b16 %v759
          %v832 = vunpack.c.l.b16 %v760
          %v833 = vunpack.c.l.b16 %v761
          %v834 = vunpack.c.l.b16 %v762
          %v835 = vunpack.c.l.b16 %v763
          %v836 = vunpack.c.l.b16 %v764
          %v837 = vunpack.c.l.b16 %v765
          %v838 = vunpack.c.l.b16 %v766
          %v839 = vunpack.c.l.b16 %v767
          %v840 = vunpack.c.l.b16 %v768
          %v841 = vunpack.c.l.b16 %v769
          %v842 = vunpack.c.l.b16 %v770
          %v843 = vunpack.c.l.b16 %v771
          %v844 = vpack.c.b16 %v813, %v812
          %v845 = vpack.c.b16 %v815, %v814
          %v846 = vpack.c.b16 %v817, %v816
          %v847 = vpack.c.b16 %v819, %v818
          %v848 = vpack.c.b16 %v821, %v820
          %v849 = vpack.c.b16 %v823, %v822
          %v850 = vpack.c.b16 %v825, %v824
          %v851 = vpack.c.b16 %v827, %v826
          %v852 = vpack.c.b16 %v829, %v828
          %v853 = vpack.c.b16 %v831, %v830
          %v854 = vpack.c.b16 %v833, %v832
          %v855 = vpack.c.b16 %v835, %v834
          %v856 = vpack.c.b16 %v837, %v836
          %v857 = vpack.c.b16 %v839, %v838
          %v858 = vpack.c.b16 %v841, %v840
          %v859 = vpack.c.b16 %v843, %v842
          %876 = vmatprep.subr.bf16.mxu0 0
          %877 = vmatpush1.bf16.msra.mxu0 %v851
          %878 = vmatprep.subr.bf16.mxu0 0
          %879 = vmatpush1.bf16.msra.mxu0 %v850
          %880 = vmatprep.subr.bf16.mxu0 0
          %881 = vmatpush1.bf16.msra.mxu0 %v849
          %882 = vmatprep.subr.bf16.mxu0 0
          %883 = vmatpush1.bf16.msra.mxu0 %v848
          %884 = vmatprep.subr.bf16.mxu0 0
          %885 = vmatpush1.bf16.msra.mxu0 %v847
          %886 = vmatprep.subr.bf16.mxu0 0
          %887 = vmatpush1.bf16.msra.mxu0 %v846
          %888 = vmatprep.subr.bf16.mxu0 0
          %889 = vmatpush1.bf16.msra.mxu0 %v845
          %890 = vmatprep.subr.bf16.mxu0 0
          %891 = vmatpush1.bf16.msra.mxu0 %v844
          %892 = vmatprep.subr.bf16.mxu0 0
          %893 = vmatpush2.bf16.msra.mxu0 %v859
          %894 = vmatprep.subr.bf16.mxu0 0
          %895 = vmatpush2.bf16.msra.mxu0 %v858
          %896 = vmatprep.subr.bf16.mxu0 0
          %897 = vmatpush2.bf16.msra.mxu0 %v857
          %898 = vmatprep.subr.bf16.mxu0 0
          %899 = vmatpush2.bf16.msra.mxu0 %v856
          %900 = vmatprep.subr.bf16.mxu0 0
          %901 = vmatpush2.bf16.msra.mxu0 %v855
          %902 = vmatprep.subr.bf16.mxu0 0
          %903 = vmatpush2.bf16.msra.mxu0 %v854
          %904 = vmatprep.subr.bf16.mxu0 0
          %905 = vmatpush2.bf16.msra.mxu0 %v853
          %906 = vmatprep.subr.bf16.mxu0 0
          %907 = vmatpush2.bf16.msra.mxu0 %v852
          %908 = vmatprep.mubr.bf16.mxu0 %v736
          %909 = vmatmul.mubr.bf16.gmra.mxu0 %v735
          %v910 = vpop.f32.mrf.mxu0
          %v911 = vadd.f32 %v778, %v910
          %v912 = vpop.f32.mrf.mxu0
          %v913 = vpop.f32.mrf.mxu0
          %v914 = vadd.f32 %v778, %v913
          %v915 = vpop.f32.mrf.mxu0
          %916 = vdwg.mxu0
          %v917 = vld [vmem:[%s357] sm:$0xff]
          %v918 = vld [vmem:[%s357 + $0x8] sm:$0xff]
          %s919 = scvt.s32.f32 %s373
          %v920 = vstv %s919
          %vm921 = vcmp.eq.f32.partialorder %v917, %v920
          %vm922 = vcmp.eq.f32.partialorder %v918, %v920
          %v923 = vld [vmem:[#allocation2] sm:$0xff]
          %v924 = vld [vmem:[#allocation2 + $0x8] sm:$0xff]
          %v925 = vsel %vm921, 1, 0
          %v926 = vsel %vm922, 1, 0
          %927 = vset.pattern.permute.xlu0 0
          %928 = vperm.xlu0 %927, %v925
          %v929 = vpop.permute.xlu0 %928
          %930 = vset.pattern.permute.xlu0 0
          %931 = vperm.xlu0 %930, %v926
          %v932 = vpop.permute.xlu0 %931
          %vm933 = vcmp.eq.s32.totalorder %v929, 1
          %vm934 = vcmp.eq.s32.totalorder %v932, 1
          %v935 = vsel %vm933, %v911, %v923
          %v936 = vsel %vm934, %v914, %v924
          %vm937 = vcmask 130048
          %938 = vst.msk [vmem:[#allocation2] sm:$0xff] %vm937, %v935
          %939 = vst.msk [vmem:[#allocation2 + $0x8] sm:$0xff] %vm937, %v936
        $region64: #{tpu_custom_call.1} parent=51 // pred_fallthru
          _
        %p940 = scmp.eq.s32.totalorder %s32, 5
        // Predicated region
        $region65: #{tpu_custom_call.1} parent=51 // pred_check
          %p941 = pneg %p940
        $region66: #{tpu_custom_call.1} parent=51 // pred_check_branch
          %943 = sbr.rel (%p941) target = $region68
        $region67: #{tpu_custom_call.1} parent=51 // pred_region
          %v944 = vld [vmem:[#allocation2] sm:$0xff]
          %v945 = vld [vmem:[#allocation2 + $0x8] sm:$0xff]
          %v946 = vld [vmem:[%s357] sm:$0xff]
          %v947 = vld [vmem:[%s357 + $0x8] sm:$0xff]
          %949 = vset.pattern.permute.xlu0 1
          %950 = vperm.xlu0 %949, %v946
          %v951 = vpop.permute.xlu0 %950
          %954 = vset.pattern.permute.xlu0 1
          %955 = vperm.xlu0 %954, %v947
          %v956 = vpop.permute.xlu0 %955
          %v958 = vsub.f32 %v944, %v951
          %v959 = vsub.f32 %v945, %v956
          %v960 = vmul.f32 %v958, %v958
          %v961 = vmul.f32 %v959, %v959
          %vm962 = vcmask 130048
          %v963 = vsel %vm962, %v960, inf
          %964 = vmin.xlane.f32.xlu0 %v963
          %v965 = vpop.xlane.xlu0 %964
          %v966 = vsel %vm962, %v961, inf
          %967 = vmin.xlane.f32.xlu0 %v966
          %v968 = vpop.xlane.xlu0 %967
          %v969 = vlaneseq
          %v970 = vand.u32 %v969, 127
          %vm971 = vcmp.eq.f32.partialorder %v960, %v965
          %vm972 = vcmp.eq.f32.partialorder %v961, %v968
          %v973 = vsel %vm971, %v970, 16
          %v974 = vsel %vm972, %v970, 16
          %v975 = vsel %vm962, %v973, 2147483647
          %v976 = vand.u32 %v975, 65535
          %v977 = vshra.s32 %v975, 16
          %v978 = vcvt.s32.f32 %v976
          %v979 = vcvt.s32.f32 %v977
          %980 = vmin.xlane.f32.xlu0 %v979
          %v981 = vpop.xlane.xlu0 %980
          %vm982 = vcmp.eq.f32.partialorder %v979, %v981
          %v983 = vsel %vm982, %v978, inf
          %984 = vmin.xlane.f32.xlu0 %v983
          %v985 = vpop.xlane.xlu0 %984
          %v986 = vcvt.f32.s32 %v985
          %v987 = vcvt.f32.s32 %v981
          %v988 = vshll.u32 %v987, 16
          %v989 = vadd.s32 %v988, %v986
          %v990 = vsel %vm962, %v974, 2147483647
          %v991 = vand.u32 %v990, 65535
          %v992 = vshra.s32 %v990, 16
          %v993 = vcvt.s32.f32 %v991
          %v994 = vcvt.s32.f32 %v992
          %995 = vmin.xlane.f32.xlu0 %v994
          %v996 = vpop.xlane.xlu0 %995
          %vm997 = vcmp.eq.f32.partialorder %v994, %v996
          %v998 = vsel %vm997, %v993, inf
          %999 = vmin.xlane.f32.xlu0 %v998
          %v1000 = vpop.xlane.xlu0 %999
          %v1001 = vcvt.f32.s32 %v1000
          %v1002 = vcvt.f32.s32 %v996
          %v1003 = vshll.u32 %v1002, 16
          %v1004 = vadd.s32 %v1003, %v1001
          %vm1005 = vcmp.eq.s32.totalorder %v970, %v989
          %vm1006 = vcmp.eq.s32.totalorder %v970, %v1004
          %v1007 = vsel %vm1005, %v944, 0.0
          %v1008 = vsel %vm1006, %v945, 0.0
          %v1009 = vsel %vm962, %v1007, 0.0
          %1010 = vadd.xlane.f32.xlu0 %v1009
          %v1011 = vpop.xlane.xlu0 %1010
          %v1012 = vsel %vm962, %v1008, 0.0
          %1013 = vadd.xlane.f32.xlu0 %v1012
          %v1014 = vpop.xlane.xlu0 %1013
          %vm1015 = vcmask 7168
          %1016 = vst.msk [vmem:[%s363] sm:$0xff] %vm1015, %v1011
          %1017 = vst.msk [vmem:[%s363 + $0x8] sm:$0xff] %vm1015, %v1014
        $region68: #{tpu_custom_call.1} parent=51 // pred_fallthru
          _
        %s1018 = smul.u32 2, %s31
        %p1019 = scmp.lt.s32.totalorder %s1018, 1
        %s1020 = scalar_select %p1019, %s1018, 1
        %s1021 = smul.addr %s1020, 8
        %s1022 = scalar_lea.vmem %s9, %s1021
        // Predicated region
        $region69: #{tpu_custom_call.1} parent=51 // pred_check
          %p1023 = pneg %p235
        $region70: #{tpu_custom_call.1} parent=51 // pred_check_branch
          %1025 = sbr.rel (%p1023) target = $region72
        $region71: #{tpu_custom_call.1} parent=51 // pred_region
          %s1026 = smul.u32 2, %s31
        $region72: #{tpu_custom_call.1} parent=51 // pred_fallthru
          _
        // Predicated region
        $region73: #{tpu_custom_call.1} parent=51 // pred_check
          %p1027 = pneg %p235
        $region74: #{tpu_custom_call.1} parent=51 // pred_check_branch
          %1029 = sbr.rel (%p1027) target = $region76
        $region75: #{tpu_custom_call.1} parent=51 // pred_region
          %s1030 = smul.u32 2, %s31
          %p1031 = scmp.lt.s32.totalorder %s1030, 1
          %s1032 = scalar_select %p1031, %s1030, 1
          %s1033 = smul.addr %s1032, 8
          %s1034 = scalar_lea.vmem %s9, %s1033
        $region76: #{tpu_custom_call.1} parent=51 // pred_fallthru
          _
      $region52: #{tpu_custom_call.1} parent=5 // pred_fallthru
        _
      %p1035 = scmp.le.s32.totalorder 2, %s22
      // Predicated region
      $region77: #{tpu_custom_call.1} parent=5 // pred_check
        %p1036 = pneg %p1035
      $region78: #{tpu_custom_call.1} parent=5 // pred_check_branch
        %1038 = sbr.rel (%p1036) target = $region80
      $region79: #{tpu_custom_call.1} parent=5 // pred_region
        %s1039 = ssub.s32 %s22, 2
      $region80: #{tpu_custom_call.1} parent=5 // pred_fallthru
        _
    $region6: #{tpu_custom_call.1} parent=1 // loop_footer
      %s26 = sadd.s32 1, %s22
    $region7: #{tpu_custom_call.1} parent=1 // loop_footer_branch
      %21 = sbr.rel target = $region3
    $region8: #{tpu_custom_call.1} parent=1 // loop_exit
      _
    %1040 = vsyncpa [#allocation6], 1
    %s1041 = scalar_lea.sflag [#allocation6], 1
    %1042 = vsyncpa %s1041, 1

</llo_original>
